<compile_context>
chip_gen: v5e
topology: v5e:2x2
jax: 0.10.0
libtpu: 0.0.40
codegen_flags: <defaults>
</compile_context>

<pallas_src>
import functools

import jax
import jax.numpy as jnp
import numpy as np
from jax.experimental import pallas as pl
from jax.experimental.pallas import tpu as pltpu


def _round_up(x, m):
    return (x + m - 1) // m * m


def _focal_loss_kernel(x_ref, t_ref, a_ref, out_ref, *, gamma, n_total, tile_n,
                       partial_out):
    x = x_ref[...]                                  # (C, TILE_N) f32 logits
    t = t_ref[...]                                  # (1, TILE_N) i32 targets
    a = a_ref[...]                                  # (C, 1)      f32 alpha
    c, tn = x.shape

    # One-hot class mask over the sublane (class) axis.
    cls = jax.lax.broadcasted_iota(jnp.int32, (c, tn), 0)
    mask = (cls == t).astype(x.dtype)               # (C, TILE_N)

    # Log-sum-exp gather of the true-class log-probability (stable, no full pt).
    m = jnp.max(x, axis=0, keepdims=True)           # (1, TILE_N)
    s = jnp.sum(jnp.exp(x - m), axis=0, keepdims=True)
    x_true = jnp.sum(x * mask, axis=0, keepdims=True)
    log_p = x_true - m - jnp.log(s)                 # (1, TILE_N)
    probs = jnp.exp(log_p)                          # (1, TILE_N)

    # Per-sample alpha via masked reduction over classes.
    alpha_n = jnp.sum(a * mask, axis=0, keepdims=True)   # (1, TILE_N)

    # (1 - p)^gamma : repeated multiply for small integer gamma (gamma=2 default).
    q = 1.0 - probs
    gi = int(gamma)
    if float(gi) == float(gamma) and 0 <= gi <= 8:
        if gi == 0:
            w = jnp.ones_like(q)
        else:
            w = q
            for _ in range(gi - 1):
                w = w * q
    else:
        w = jnp.power(q, jnp.float32(gamma))

    loss = -alpha_n * w * log_p                     # (1, TILE_N)

    if partial_out:
        # Zero padded (out-of-range) columns, then emit one lane-dense
        # (1, 128) partial-sum block per tile (summed again in the wrapper).
        col = (jax.lax.broadcasted_iota(jnp.int32, (1, tn), 1)
               + pl.program_id(0) * tile_n)
        loss = jnp.where(col < n_total, loss, 0.0)
        out_ref[...] = jnp.broadcast_to(jnp.sum(loss), (1, 128))
    else:
        out_ref[...] = loss                         # lane-dense per-sample loss


def multi_ce_focal_loss(predict, target, *, num_classes, gamma=2.0, alpha=None,
                        reduction="mean", tile_n=512):
    """Pallas TPU implementation of MultiCEFocalLoss.forward.

    predict: (N, C) float32 logits
    target:  (N,)   int32 class ids in [0, C)
    """
    n, c = predict.shape
    assert c == num_classes

    if alpha is None:
        alpha_col = jnp.ones((num_classes, 1), dtype=jnp.float32)
    else:
        alpha_col = jnp.asarray(alpha, dtype=jnp.float32).reshape(num_classes, 1)

    # Lane-dense layout: classes on sublanes, samples on lanes.
    x = predict.astype(jnp.float32).T                       # (C, N)
    t = target.astype(jnp.int32).reshape(1, n)              # (1, N)

    # Tile the sample axis (multiple of 128 lanes). Small C keeps the
    # double-buffered footprint tiny on all generations (v5e/v6e/v7x).
    tile = min(_round_up(int(tile_n), 128), _round_up(n, 128))
    n_pad = _round_up(n, tile)
    num_tiles = n_pad // tile

    if n_pad != n:
        x = jnp.pad(x, ((0, 0), (0, n_pad - n)))
        t = jnp.pad(t, ((0, 0), (0, n_pad - n)))

    partial = reduction in ("mean", "sum")
    kernel = functools.partial(_focal_loss_kernel, gamma=float(gamma),
                               n_total=n, tile_n=tile, partial_out=partial)

    if partial:
        out_shape = jax.ShapeDtypeStruct((1, num_tiles * 128), jnp.float32)
        out_spec = pl.BlockSpec((1, 128), lambda i: (0, i))
    else:
        out_shape = jax.ShapeDtypeStruct((1, n_pad), jnp.float32)
        out_spec = pl.BlockSpec((1, tile), lambda i: (0, i))

    out = pl.pallas_call(
        kernel,
        out_shape=out_shape,
        grid=(num_tiles,),
        in_specs=[
            pl.BlockSpec((c, tile), lambda i: (0, i)),      # logits   (C, tile)
            pl.BlockSpec((1, tile), lambda i: (0, i)),      # targets  (1, tile)
            pl.BlockSpec((c, 1), lambda i: (0, 0)),         # alpha    (C, 1)
        ],
        out_specs=out_spec,
        compiler_params=pltpu.CompilerParams(
            dimension_semantics=("parallel",)),
    )(x, t, alpha_col)

    if reduction == "mean":
        total = jnp.sum(out.reshape(num_tiles, 128)[:, 0])
        return total * jnp.float32(1.0 / n)                 # divide by TOTAL n
    if reduction == "sum":
        return jnp.sum(out.reshape(num_tiles, 128)[:, 0])
    return out[0, :n].reshape(n, 1)                         # (N, 1) like PyTorch


def _reference(predict, target, num_classes, gamma, alpha_vec, reduction):
    pt = jax.nn.softmax(predict, axis=1)
    mask = jax.nn.one_hot(target, num_classes, dtype=predict.dtype)
    probs = jnp.sum(pt * mask, axis=1, keepdims=True)
    alpha = jnp.asarray(alpha_vec).reshape(-1)[target].reshape(-1, 1)
    loss = -alpha * jnp.power(1.0 - probs, gamma) * jnp.log(probs)
    if reduction == "mean":
        return loss.mean()
    if reduction == "sum":
        return loss.sum()
    return loss


if __name__ == "__main__":
    key = jax.random.PRNGKey(0)
    k1, k2 = jax.random.split(key)

    num_classes = 4
    batch = 300   # non-multiple of 128: exercises padding + ragged-tile masking

    predict = jax.random.normal(k1, (batch, num_classes), dtype=jnp.float32)
    target = jax.random.randint(k2, (batch,), 0, num_classes, dtype=jnp.int32)
    alpha = jnp.array([0.1, 0.2, 0.3, 0.4], dtype=jnp.float32)

    # tile_n=128 forces a multi-tile grid even at this small batch size.
    for reduction in ("mean", "sum", "none"):
        out = multi_ce_focal_loss(predict, target, num_classes=num_classes,
                                  gamma=2.0, alpha=alpha, reduction=reduction,
                                  tile_n=128)
        out = jax.block_until_ready(out)
        ref = _reference(predict, target, num_classes, 2.0, alpha, reduction)
        np.testing.assert_allclose(np.asarray(out), np.asarray(ref),
                                   rtol=1e-5, atol=1e-6)

    # Default alpha (ones), default tile size, gamma=2, mean reduction.
    out = multi_ce_focal_loss(predict, target, num_classes=num_classes, gamma=2.0)
    out = jax.block_until_ready(out)
    ref = _reference(predict, target, num_classes, 2.0,
                     jnp.ones((num_classes,), jnp.float32), "mean")
    np.testing.assert_allclose(np.asarray(out), np.asarray(ref),
                               rtol=1e-5, atol=1e-6)

    print("KERNEL_OK")
</pallas_src>

<mosaic_0001>
module attributes {stable_mosaic.version = 11 : i64} {
  func.func @_focal_loss_kernel(%arg0: i32, %arg1: memref<4x128xf32, #tpu.memory_space<vmem>>, %arg2: memref<1x128xi32, #tpu.memory_space<vmem>>, %arg3: memref<4x1xf32, #tpu.memory_space<vmem>>, %arg4: memref<1x128xf32, #tpu.memory_space<vmem>>) attributes {dimension_semantics = [#tpu.dimension_semantics<parallel>], iteration_bounds = array<i64: 3>, scalar_prefetch = 0 : i64, scratch_operands = 0 : i64, tpu.core_type = #tpu.core_type<tc>, window_params = [{transform_indices = @transform_0, window_bounds = array<i64: 4, 128>}, {transform_indices = @transform_1, window_bounds = array<i64: 1, 128>}, {pipeline_mode = #tpu.pipeline_mode<synchronous>, transform_indices = @transform_2, window_bounds = array<i64: 4, 1>}, {transform_indices = @transform_3, window_bounds = array<i64: 1, 128>}]} {
    %c0 = arith.constant 0 : index
    %c0_0 = arith.constant 0 : index
    %0 = vector.load %arg1[%c0, %c0_0] : memref<4x128xf32, #tpu.memory_space<vmem>>, vector<4x128xf32>
    %c0_1 = arith.constant 0 : index
    %c0_2 = arith.constant 0 : index
    %1 = vector.load %arg2[%c0_1, %c0_2] : memref<1x128xi32, #tpu.memory_space<vmem>>, vector<1x128xi32>
    %c0_3 = arith.constant 0 : index
    %c0_4 = arith.constant 0 : index
    %2 = vector.load %arg3[%c0_3, %c0_4] : memref<4x1xf32, #tpu.memory_space<vmem>>, vector<4x1xf32>
    %3 = tpu.iota {dimensions = array<i32: 0>} : vector<4x128xi32>
    %4 = vector.broadcast %1 : vector<1x128xi32> to vector<4x128xi32>
    %5 = arith.cmpi eq, %3, %4 : vector<4x128xi32>
    %6 = arith.extui %5 : vector<4x128xi1> to vector<4x128xi32>
    %7 = arith.sitofp %6 : vector<4x128xi32> to vector<4x128xf32>
    %cst = arith.constant dense<0xFF800000> : vector<128xf32>
    %8 = vector.multi_reduction <maximumf>, %0, %cst [0] : vector<4x128xf32> to vector<128xf32>
    %9 = vector.shape_cast %8 : vector<128xf32> to vector<1x128xf32>
    %10 = vector.broadcast %9 : vector<1x128xf32> to vector<4x128xf32>
    %11 = arith.subf %0, %10 : vector<4x128xf32>
    %12 = math.exp %11 : vector<4x128xf32>
    %cst_5 = arith.constant dense<0.000000e+00> : vector<128xf32>
    %13 = vector.multi_reduction <add>, %12, %cst_5 [0] : vector<4x128xf32> to vector<128xf32>
    %14 = vector.shape_cast %13 : vector<128xf32> to vector<1x128xf32>
    %15 = arith.mulf %0, %7 : vector<4x128xf32>
    %cst_6 = arith.constant dense<0.000000e+00> : vector<128xf32>
    %16 = vector.multi_reduction <add>, %15, %cst_6 [0] : vector<4x128xf32> to vector<128xf32>
    %17 = vector.shape_cast %16 : vector<128xf32> to vector<1x128xf32>
    %18 = arith.subf %17, %9 : vector<1x128xf32>
    %19 = math.log %14 : vector<1x128xf32>
    %20 = arith.subf %18, %19 : vector<1x128xf32>
    %21 = math.exp %20 : vector<1x128xf32>
    %22 = vector.broadcast %2 : vector<4x1xf32> to vector<4x128xf32>
    %23 = arith.mulf %22, %7 : vector<4x128xf32>
    %cst_7 = arith.constant dense<0.000000e+00> : vector<128xf32>
    %24 = vector.multi_reduction <add>, %23, %cst_7 [0] : vector<4x128xf32> to vector<128xf32>
    %25 = vector.shape_cast %24 : vector<128xf32> to vector<1x128xf32>
    %cst_8 = arith.constant 1.000000e+00 : f32
    %26 = vector.broadcast %cst_8 : f32 to vector<1x128xf32>
    %27 = arith.subf %26, %21 : vector<1x128xf32>
    %28 = arith.mulf %27, %27 : vector<1x128xf32>
    %cst_9 = arith.constant 0.000000e+00 : f32
    %29 = vector.broadcast %cst_9 : f32 to vector<1x128xf32>
    %30 = arith.subf %29, %25 : vector<1x128xf32>
    %31 = arith.mulf %30, %28 : vector<1x128xf32>
    %32 = arith.mulf %31, %20 : vector<1x128xf32>
    %33 = tpu.iota {dimensions = array<i32: 1>} : vector<1x128xi32>
    %c128_i32 = arith.constant 128 : i32
    %34 = arith.muli %arg0, %c128_i32 : i32
    %35 = vector.broadcast %34 : i32 to vector<1x128xi32>
    %36 = arith.addi %33, %35 : vector<1x128xi32>
    %c300_i32 = arith.constant 300 : i32
    %37 = vector.broadcast %c300_i32 : i32 to vector<1x128xi32>
    %38 = arith.cmpi slt, %36, %37 : vector<1x128xi32>
    %cst_10 = arith.constant 0.000000e+00 : f32
    %39 = vector.broadcast %cst_10 : f32 to vector<1x128xf32>
    %40 = arith.select %38, %32, %39 : vector<1x128xi1>, vector<1x128xf32>
    %41 = vector.shape_cast %40 : vector<1x128xf32> to vector<1x1x128xf32>
    %cst_11 = arith.constant dense<0.000000e+00> : vector<1xf32>
    %42 = vector.multi_reduction <add>, %41, %cst_11 [1, 2] : vector<1x1x128xf32> to vector<1xf32>
    %43 = vector.shape_cast %42 : vector<1xf32> to vector<1x1x1xf32>
    %44 = vector.extract %43[0, 0, 0] : f32 from vector<1x1x1xf32>
    %45 = vector.broadcast %44 : f32 to vector<1x128xf32>
    %c0_12 = arith.constant 0 : index
    %c0_13 = arith.constant 0 : index
    %46 = vector.load %arg4[%c0_12, %c0_13] : memref<1x128xf32, #tpu.memory_space<vmem>>, vector<1x128xf32>
    tpu.vector_store %arg4[%c0_12, %c0_13], %45 {strides = array<i32>} : memref<1x128xf32, #tpu.memory_space<vmem>>, vector<1x128xf32>,
    return
  }
  func.func @transform_0(%arg0: i32) -> (i32, i32) {
    %c0_i32 = arith.constant 0 : i32
    %c0_i32_0 = arith.constant 0 : i32
    return %c0_i32, %arg0 : i32, i32
  }
  func.func @transform_1(%arg0: i32) -> (i32, i32) {
    %c0_i32 = arith.constant 0 : i32
    %c0_i32_0 = arith.constant 0 : i32
    return %c0_i32, %arg0 : i32, i32
  }
  func.func @transform_2(%arg0: i32) -> (i32, i32) {
    %c0_i32 = arith.constant 0 : i32
    %c0_i32_0 = arith.constant 0 : i32
    %c0_i32_1 = arith.constant 0 : i32
    return %c0_i32, %c0_i32_0 : i32, i32
  }
  func.func @transform_3(%arg0: i32) -> (i32, i32) {
    %c0_i32 = arith.constant 0 : i32
    %c0_i32_0 = arith.constant 0 : i32
    return %c0_i32, %arg0 : i32, i32
  }
}

</mosaic_0001>

<llo_original>
// kernel: tpu_custom_call.1
$region0: #{tpu_custom_call.1}
  #allocation0 [shape = 'u32[]', space=smem, size = 0x4, offset = 0x4, fixed_abs, tag = 'smem constant byte address 0x4 - core index']
  #allocation1 [shape = 'u32[72,128]{1,0:T(1,128)}', space=vmem, size = 0x9000, scoped, tag = 'internal scratch']
  %s0 = inlined_call_operand.hbm [shape: f32[4,384], index: 0, kind: input, shape index: {}]
  %s1 = inlined_call_operand.vmem [shape: s32[1,384], index: 1, kind: input, shape index: {}]
  %s2 = inlined_call_operand.vmem [shape: f32[4,1], index: 2, kind: input, shape index: {}]
  %s3 = inlined_call_operand.hbm [shape: f32[1,384], index: 3, kind: output, shape index: {}]
  %s4 = sld [smem:[#allocation0]]
  $region49: #{tpu_custom_call.1} parent=0
    _
  %s6 = ssub.s32 1, %s4
  %s7 = scalar_select 0, %s6, %s4
  $region1: #{tpu_custom_call.1} parent=0
    #allocation2 [shape = 'u8[4096]{0}', space=vmem, size = 0x1000, scoped, tag = 'input window, operand 0']
    #allocation3 [shape = 's32[2]{0}', space=sflag, size = 0x8, scoped, tag = 'scoped memory for tpu_custom_call.1']
    #allocation4 [shape = 's32[2]{0}', space=sflag, size = 0x8, scoped, tag = 'scoped memory for tpu_custom_call.1']
    #allocation5 [shape = 'u8[1024]{0}', space=vmem, size = 0x400, scoped, tag = 'output window, operand 0']
    %8 = vsyncpa [#allocation3], 0
    %s9 = scalar_lea.sflag [#allocation3], 1
    %10 = vsyncpa %s9, 0
    %11 = vsyncpa [#allocation4], 0
    %s12 = scalar_lea.sflag [#allocation4], 1
    %13 = vsyncpa %s12, 0
    loop: start=0, step=1, limit=5
    $region2: #{tpu_custom_call.1} parent=1 // loop_pre_header
      _
    $region3: #{tpu_custom_call.1} parent=1 // loop_header
      %s15 = sphi 0, %s19
      %p16 = scmp.ge.s32.totalorder %s15, 5
      %s25 = sphi 0, %s27
      %s28 = sphi 0, %s25
      %s29 = sphi 0, %s28
      %s45 = sphi 0, %s29
      %s51 = sphi 0, %s53
      %s54 = sphi 0, %s51
      %s55 = sphi 0, %s54
      %s71 = sphi 0, %s55
      %s75 = sphi 0, %s75
      %s77 = sphi 0, %s75
      %s78 = sphi 0, %s77
      %s92 = sphi 0, %s78
      %s98 = sphi 0, %s100
      %s101 = sphi 0, %s98
      %s102 = sphi 0, %s101
      %s118 = sphi 0, %s102
    $region4: #{tpu_custom_call.1} parent=1 // loop_header_branch
      %18 = sbr.rel (%p16) target = $region8
    $region5: #{tpu_custom_call.1} parent=1 // loop_body
      %s20 = ssub.s32 %s15, 1
      %s21 = ssub.s32 %s15, 2
      %s22 = sadd.s32 %s15, 1
      %s23 = ssub.s32 %s15, %s22
      %p24 = scmp.eq.s32.totalorder %s23, 0
      %s26 = sadd.s32 %s25, 1
      %s27 = scalar_select %p24, %s25, %s26
      %p30 = pneg %p24
      %p31 = scmp.eq.s32.totalorder %s15, 2
      %p32 = por %p30, %p31
      %p33 = scmp.ne.s32.totalorder %s25, %s28
      %p34 = scmp.eq.s32.totalorder %s15, 0
      %p35 = por %p33, %p34
      %p36 = scmp.ne.s32.totalorder %s25, %s28
      %p37 = scmp.eq.s32.totalorder %s20, 2
      %p38 = por %p36, %p37
      %p39 = scmp.ne.s32.totalorder %s28, %s29
      %p40 = scmp.eq.s32.totalorder %s20, 0
      %p41 = por %p39, %p40
      %p42 = scmp.ne.s32.totalorder %s28, %s29
      %p43 = scmp.eq.s32.totalorder %s21, 2
      %p44 = por %p42, %p43
      %p46 = scmp.ne.s32.totalorder %s29, %s45
      %p47 = scmp.eq.s32.totalorder %s21, 0
      %p48 = por %p46, %p47
      %s49 = ssub.s32 %s15, %s22
      %p50 = scmp.eq.s32.totalorder %s49, 0
      %s52 = sadd.s32 %s51, 1
      %s53 = scalar_select %p50, %s51, %s52
      %p56 = pneg %p50
      %p57 = scmp.eq.s32.totalorder %s15, 2
      %p58 = por %p56, %p57
      %p59 = scmp.ne.s32.totalorder %s51, %s54
      %p60 = scmp.eq.s32.totalorder %s15, 0
      %p61 = por %p59, %p60
      %p62 = scmp.ne.s32.totalorder %s51, %s54
      %p63 = scmp.eq.s32.totalorder %s20, 2
      %p64 = por %p62, %p63
      %p65 = scmp.ne.s32.totalorder %s54, %s55
      %p66 = scmp.eq.s32.totalorder %s20, 0
      %p67 = por %p65, %p66
      %p68 = scmp.ne.s32.totalorder %s54, %s55
      %p69 = scmp.eq.s32.totalorder %s21, 2
      %p70 = por %p68, %p69
      %p72 = scmp.ne.s32.totalorder %s55, %s71
      %p73 = scmp.eq.s32.totalorder %s21, 0
      %p74 = por %p72, %p73
      %s76 = sadd.s32 %s75, 1
      %p79 = scmp.eq.s32.totalorder %s15, 2
      %p80 = scmp.ne.s32.totalorder %s75, %s77
      %p81 = scmp.eq.s32.totalorder %s15, 0
      %p82 = por %p80, %p81
      %p83 = scmp.ne.s32.totalorder %s75, %s77
      %p84 = scmp.eq.s32.totalorder %s20, 2
      %p85 = por %p83, %p84
      %p86 = scmp.ne.s32.totalorder %s77, %s78
      %p87 = scmp.eq.s32.totalorder %s20, 0
      %p88 = por %p86, %p87
      %p89 = scmp.ne.s32.totalorder %s77, %s78
      %p90 = scmp.eq.s32.totalorder %s21, 2
      %p91 = por %p89, %p90
      %p93 = scmp.ne.s32.totalorder %s78, %s92
      %p94 = scmp.eq.s32.totalorder %s21, 0
      %p95 = por %p93, %p94
      %s96 = ssub.s32 %s15, %s22
      %p97 = scmp.eq.s32.totalorder %s96, 0
      %s99 = sadd.s32 %s98, 1
      %s100 = scalar_select %p97, %s98, %s99
      %p103 = pneg %p97
      %p104 = scmp.eq.s32.totalorder %s15, 2
      %p105 = por %p103, %p104
      %p106 = scmp.ne.s32.totalorder %s98, %s101
      %p107 = scmp.eq.s32.totalorder %s15, 0
      %p108 = por %p106, %p107
      %p109 = scmp.ne.s32.totalorder %s98, %s101
      %p110 = scmp.eq.s32.totalorder %s20, 2
      %p111 = por %p109, %p110
      %p112 = scmp.ne.s32.totalorder %s101, %s102
      %p113 = scmp.eq.s32.totalorder %s20, 0
      %p114 = por %p112, %p113
      %p115 = scmp.ne.s32.totalorder %s101, %s102
      %p116 = scmp.eq.s32.totalorder %s21, 2
      %p117 = por %p115, %p116
      %p119 = scmp.ne.s32.totalorder %s102, %s118
      %p120 = scmp.eq.s32.totalorder %s21, 0
      %p121 = por %p119, %p120
      %p122 = scmp.le.s32.totalorder 1, %s15
      %p123 = scmp.lt.s32.totalorder %s15, 4
      %p124 = pnand %p122, %p123
      %p125 = pneg %p124
      // Predicated region
      $region9: #{tpu_custom_call.1} parent=5 // pred_check
        _
      $region10: #{tpu_custom_call.1} parent=5 // pred_check_branch
        %127 = sbr.rel (%p124) target = $region12
      $region11: #{tpu_custom_call.1} parent=5 // pred_region
        %s128 = ssub.s32 %s15, 1
        // Predicated region
        $region13: #{tpu_custom_call.1} parent=11 // pred_check
          %p129 = pneg %p88
        $region14: #{tpu_custom_call.1} parent=11 // pred_check_branch
          %131 = sbr.rel (%p129) target = $region16
        $region15: #{tpu_custom_call.1} parent=11 // pred_region
          _
        $region16: #{tpu_custom_call.1} parent=11 // pred_fallthru
          _
      $region12: #{tpu_custom_call.1} parent=5 // pred_fallthru
        _
      %p132 = scmp.lt.s32.totalorder %s15, 3
      // Predicated region
      $region17: #{tpu_custom_call.1} parent=5 // pred_check
        %p133 = pneg %p132
      $region18: #{tpu_custom_call.1} parent=5 // pred_check_branch
        %135 = sbr.rel (%p133) target = $region20
      $region19: #{tpu_custom_call.1} parent=5 // pred_region
        // Predicated region
        $region21: #{tpu_custom_call.1} parent=19 // pred_check
          %p136 = pneg %p35
        $region22: #{tpu_custom_call.1} parent=19 // pred_check_branch
          %138 = sbr.rel (%p136) target = $region24
        $region23: #{tpu_custom_call.1} parent=19 // pred_region
          %s139 = sand.u32 %s25, 1
          %s140 = scalar_lea.sflag [#allocation3], %s139
          %s141 = sand.u32 %s25, 1
          %s142 = smul.addr %s141, 4
          %s143 = scalar_lea.vmem [#allocation2], %s142
          %145 = vsyncadd %s140, 0
          %s146 = smul.addr %s15, 4
          %s147 = scalar_lea.hbm %s0, %s146
          %s149 = sshll.u32 %s147, 4
          %s150 = int_to_ptr.hbm [resolvable:$true] %s149
          %s151 = sshll.u32 %s143, 4
          %s152 = int_to_ptr.vmem [resolvable:$true] %s151
          %154 = dma.hbm_to_vmem [thread:$0]  %s150, 64, %s152, %s140
        $region24: #{tpu_custom_call.1} parent=19 // pred_fallthru
          _
        // Predicated region
        $region25: #{tpu_custom_call.1} parent=19 // pred_check
          %p155 = pneg %p61
        $region26: #{tpu_custom_call.1} parent=19 // pred_check_branch
          %157 = sbr.rel (%p155) target = $region28
        $region27: #{tpu_custom_call.1} parent=19 // pred_region
          %p158 = scmp.lt.s32.totalorder %s15, 2
          %s159 = scalar_select %p158, %s15, 2
          %s160 = scalar_lea.vmem %s1, %s159
        $region28: #{tpu_custom_call.1} parent=19 // pred_fallthru
          _
      $region20: #{tpu_custom_call.1} parent=5 // pred_fallthru
        _
      %p161 = scmp.le.s32.totalorder 1, %s15
      %p162 = scmp.lt.s32.totalorder %s15, 4
      %p163 = pnand %p161, %p162
      %p164 = pneg %p163
      // Predicated region
      $region29: #{tpu_custom_call.1} parent=5 // pred_check
        _
      $region30: #{tpu_custom_call.1} parent=5 // pred_check_branch
        %166 = sbr.rel (%p163) target = $region32
      $region31: #{tpu_custom_call.1} parent=5 // pred_region
        %s167 = ssub.s32 %s15, 1
        %s168 = sand.u32 %s28, 1
        %s169 = scalar_lea.sflag [#allocation3], %s168
        %s170 = sand.u32 %s28, 1
        %s171 = smul.addr %s170, 4
        %s172 = scalar_lea.vmem [#allocation2], %s171
        // Predicated region
        $region33: #{tpu_custom_call.1} parent=31 // pred_check
          %p173 = pneg %p41
        $region34: #{tpu_custom_call.1} parent=31 // pred_check_branch
          %175 = sbr.rel (%p173) target = $region36
        $region35: #{tpu_custom_call.1} parent=31 // pred_region
          %177 = dma.done %s169, 64
        $region36: #{tpu_custom_call.1} parent=31 // pred_fallthru
          _
        %s178 = sand.u32 %s28, 1
        %s179 = scalar_lea.sflag [#allocation3], %s178
        %s180 = sand.u32 %s28, 1
        %s181 = smul.addr %s180, 4
        %s182 = scalar_lea.vmem [#allocation2], %s181
        %p183 = pneg %p41
        %p184 = pneg %p38
        %p185 = scmp.lt.s32.totalorder %s20, 2
        %s186 = scalar_select %p185, %s20, 2
        %s187 = scalar_lea.vmem %s1, %s186
        %p188 = pneg %p67
        %p189 = pneg %p64
        %p190 = pneg %p88
        %p191 = pneg %p85
        %p192 = pneg %p114
        %p193 = pneg %p111
        %s194 = sand.u32 %s101, 1
        %s195 = scalar_lea.sflag [#allocation4], %s194
        %s196 = sand.u32 %s101, 1
        %s197 = scalar_lea.vmem [#allocation5], %s196
        %p198 = scmp.lt.s32.totalorder %s20, 2
        %s199 = scalar_select %p198, %s20, 2
        %s200 = scalar_lea.vmem %s1, %s199
        %v201 = vld [vmem:[%s172] sm:$0xf]
        %v202 = vld [vmem:[%s200] sm:$0x1]
        %v203 = vld [vmem:[%s2] sm:$0xf]
        %v204 = vlaneseq
        %v205 = vshrl.u32 %v204, 7
        %v206 = vperm.slane %v202, 0
        %vm207 = vcmp.eq.s32.totalorder %v205, %v206
        %v208 = vsel %vm207, 1, 0
        %v209 = vcvt.s32.f32 %v208
        %vm210 = vcmask 1043456
        %v211 = vsel %vm210, %v201, -inf
        %v212 = vrot.slane %v211, 4
        %v213 = vmax.f32 %v211, %v212
        %v214 = vrot.slane %v213, 2
        %v215 = vmax.f32 %v213, %v214
        %v216 = vrot.slane %v215, 1
        %v217 = vmax.f32 %v215, %v216
        %v218 = vsub.f32 %v201, %v217
        %v219 = vmul.f32 %v218, 1.442695
        %v220 = vpow.pop %v219
        %v221 = vsel %vm210, %v220, 0.0
        %v222 = vrot.slane %v221, 4
        %v223 = vadd.f32 %v221, %v222
        %v224 = vrot.slane %v223, 2
        %v225 = vadd.f32 %v223, %v224
        %v226 = vrot.slane %v225, 1
        %v227 = vadd.f32 %v225, %v226
        %v228 = vmul.f32 %v201, %v209
        %v229 = vsel %vm210, %v228, 0.0
        %v230 = vrot.slane %v229, 4
        %v231 = vadd.f32 %v229, %v230
        %v232 = vrot.slane %v231, 2
        %v233 = vadd.f32 %v231, %v232
        %v234 = vrot.slane %v233, 1
        %v235 = vadd.f32 %v233, %v234
        %v236 = vsub.f32 %v235, %v217
        %v237 = vlog2.pop %v227
        %v238 = vmul.f32 %v237, 0.6931472
        %v239 = vsub.f32 %v236, %v238
        %v240 = vmul.f32 %v239, 1.442695
        %v241 = vpow.pop %v240
        %243 = vset.pattern.permute.xlu0 0
        %244 = vperm.xlu0 %243, %v203
        %v245 = vpop.permute.xlu0 %244
        %v247 = vmul.f32 %v245, %v209
        %v248 = vsel %vm210, %v247, 0.0
        %v249 = vrot.slane %v248, 4
        %v250 = vadd.f32 %v248, %v249
        %v251 = vrot.slane %v250, 2
        %v252 = vadd.f32 %v250, %v251
        %v253 = vrot.slane %v252, 1
        %v254 = vadd.f32 %v252, %v253
        %v255 = vsub.f32 1.0, %v241
        %v256 = vmul.f32 %v255, %v255
        %v257 = vsub.f32 0.0, %v254
        %v258 = vmul.f32 %v257, %v256
        %v259 = vmul.f32 %v258, %v239
        %v260 = vlaneseq
        %v261 = vand.u32 %v260, 127
        %s262 = smul.u32 %s20, 128
        %v263 = vstv %s262
        %v264 = vadd.s32 %v261, %v263
        %vm265 = vcmp.lt.s32.totalorder %v264, 300
        %v266 = vsel %vm265, %v259, 0.0
        %vm267 = vcmask 1040384
        %v268 = vsel %vm267, %v266, 0.0
        %269 = vadd.xlane.f32.xlu0 %v268
        %v270 = vpop.xlane.xlu0 %269
        %v271 = vrot.slane %v270, 4
        %v272 = vadd.f32 %v270, %v271
        %v273 = vrot.slane %v272, 2
        %v274 = vadd.f32 %v272, %v273
        %v275 = vrot.slane %v274, 1
        %v276 = vadd.f32 %v274, %v275
        %s277 = vtos %v276
        %v278 = vstv %s277
        %279 = vst [vmem:[%s197] sm:$0x1] %v278
        %s280 = sand.u32 %s101, 1
        %s281 = scalar_lea.sflag [#allocation4], %s280
        %s282 = sand.u32 %s101, 1
        %s283 = scalar_lea.vmem [#allocation5], %s282
        // Predicated region
        $region37: #{tpu_custom_call.1} parent=31 // pred_check
          %p284 = pneg %p111
        $region38: #{tpu_custom_call.1} parent=31 // pred_check_branch
          %286 = sbr.rel (%p284) target = $region40
        $region39: #{tpu_custom_call.1} parent=31 // pred_region
          %288 = vsyncadd %s281, 0
          %s289 = scalar_lea.hbm %s3, %s20
          %s291 = sshll.u32 %s283, 4
          %s292 = int_to_ptr.vmem [resolvable:$true] %s291
          %s293 = sshll.u32 %s289, 4
          %s294 = int_to_ptr.hbm [resolvable:$true] %s293
          %296 = dma.vmem_to_hbm [thread:$0]  %s292, 16, %s294, %s281
        $region40: #{tpu_custom_call.1} parent=31 // pred_fallthru
          _
      $region32: #{tpu_custom_call.1} parent=5 // pred_fallthru
        _
      %p297 = scmp.le.s32.totalorder 2, %s15
      // Predicated region
      $region41: #{tpu_custom_call.1} parent=5 // pred_check
        %p298 = pneg %p297
      $region42: #{tpu_custom_call.1} parent=5 // pred_check_branch
        %300 = sbr.rel (%p298) target = $region44
      $region43: #{tpu_custom_call.1} parent=5 // pred_region
        %s301 = ssub.s32 %s15, 2
        // Predicated region
        $region45: #{tpu_custom_call.1} parent=43 // pred_check
          %p302 = pneg %p117
        $region46: #{tpu_custom_call.1} parent=43 // pred_check_branch
          %304 = sbr.rel (%p302) target = $region48
        $region47: #{tpu_custom_call.1} parent=43 // pred_region
          %s305 = sand.u32 %s102, 1
          %s306 = scalar_lea.sflag [#allocation4], %s305
          %s307 = sand.u32 %s102, 1
          %s308 = scalar_lea.vmem [#allocation5], %s307
          %310 = dma.done %s306, 16
        $region48: #{tpu_custom_call.1} parent=43 // pred_fallthru
          _
      $region44: #{tpu_custom_call.1} parent=5 // pred_fallthru
        _
    $region6: #{tpu_custom_call.1} parent=1 // loop_footer
      %s19 = sadd.s32 1, %s15
    $region7: #{tpu_custom_call.1} parent=1 // loop_footer_branch
      %14 = sbr.rel target = $region3
    $region8: #{tpu_custom_call.1} parent=1 // loop_exit
      _
    %311 = vsyncpa [#allocation3], 1
    %s312 = scalar_lea.sflag [#allocation3], 1
    %313 = vsyncpa %s312, 1
    %314 = vsyncpa [#allocation4], 1
    %s315 = scalar_lea.sflag [#allocation4], 1
    %316 = vsyncpa %s315, 1

</llo_original>
